<compile_context>
chip_gen: v5e
topology: v5e:2x2
jax: 0.10.0
libtpu: 0.0.40
codegen_flags: <defaults>
</compile_context>

<pallas_src>
import jax
import jax.numpy as jnp
from jax.experimental import pallas as pl
from jax.experimental.pallas import tpu as pltpu

OUT_PAD = 128  # lane-dense padded output width (true output width is 3)
_L_CANDIDATES = (2048, 1024, 512, 256, 128, 64, 32, 16, 8)
_VMEM_BUDGET = 24 * 1024 * 1024  # stay well under the 32 MiB scoped default


def _round_up(x, m):
    return ((x + m - 1) // m) * m


def _vmem_bytes(G, C, TL, N, D, H1, H2, cbytes):
    """Rough per-step VMEM estimate (double-buffered input tile + intermediates
    + resident weights)."""
    x_tile = 2 * G * C * TL * N * 4            # double-buffered f32 input tile
    xcat = G * TL * D * (4 + cbytes)           # lane-dense concat + cast copy
    h1 = G * TL * H1 * (4 + cbytes)
    h2 = G * TL * H2 * (4 + cbytes)
    y = G * TL * OUT_PAD * 4
    w = 2 * (D * H1 + H1 * H2 + H2 * OUT_PAD) * cbytes
    b = 2 * (H1 + H2 + OUT_PAD) * 4
    acc = G * 8 * OUT_PAD * 4
    return x_tile + xcat + h1 + h2 + y + w + b + acc


def _pick_l_tile(L, fits):
    """Largest L tile (multiple of 8, <=2048) that fits the VMEM budget.
    Prefers an exactly-dividing tile when it is at least half as large as the
    best ragged tile; otherwise the final tile is masked in-kernel."""
    lcap = _round_up(L, 8)
    ragged_t = 8
    for t in _L_CANDIDATES:
        if t <= lcap and fits(t):
            ragged_t = t
            break
    for t in _L_CANDIDATES:
        if t <= lcap and L % t == 0 and fits(t) and 2 * t >= ragged_t:
            return t
    return ragged_t


def _make_mlp_kernel(G, C, TL, L_total, ragged, compute_dtype):
    inv_l = 1.0 / float(L_total)
    SUB = 8
    n_sub = TL // SUB

    def kernel(x_ref, w1_ref, b1_ref, w2_ref, b2_ref, w3_ref, b3_ref,
               o_ref, acc_ref):
        li = pl.program_id(1)

        @pl.when(li == 0)
        def _init():
            acc_ref[...] = jnp.zeros_like(acc_ref)

        # valid-row mask for a ragged final L tile (static no-op otherwise)
        if ragged:
            row = jax.lax.broadcasted_iota(jnp.int32, (TL, 1), 0)
            valid = (row + li * TL) < L_total                     # (TL, 1) bool

        # ---- assemble lane-dense (G*TL, C*N) activation ---------------------
        # feat[b, l, c*N + n] = x[b, c, l, n]  ==  concat of C lane slices,
        # so the PyTorch permute(0,2,1,3)+reshape never touches HBM.
        slabs = []
        for g in range(G):
            xg = jnp.concatenate([x_ref[g, c] for c in range(C)], axis=-1)
            if ragged:
                xg = jnp.where(valid, xg, 0.0)   # also kills stale-VMEM NaNs
            slabs.append(xg)
        xcat = slabs[0] if G == 1 else jnp.concatenate(slabs, axis=0)
        xcat = xcat.astype(compute_dtype)                          # (G*TL, D)

        # ---- 3-layer MLP: single fused matmul per layer ----------------------
        h1 = jnp.dot(xcat, w1_ref[...], preferred_element_type=jnp.float32)
        h1 = jnp.maximum(h1 + b1_ref[...], 0.0)                    # (G*TL, 512)

        h2 = jnp.dot(h1.astype(compute_dtype), w2_ref[...],
                     preferred_element_type=jnp.float32) + b2_ref[...]
        h2 = jnp.maximum(h2, 0.0)                                  # (G*TL, 128)

        y = jnp.dot(h2.astype(compute_dtype), w3_ref[...],
                    preferred_element_type=jnp.float32) + b3_ref[...]
        y = jnp.maximum(y, 0.0)                                    # (G*TL, 128)

        # ---- running sum over L: sublane-group vreg adds only ----------------
        yr = y.reshape(G, n_sub, SUB, OUT_PAD)
        if ragged:
            yr = jnp.where(valid.reshape(1, n_sub, SUB, 1), yr, 0.0)
        acc_ref[...] += jnp.sum(yr, axis=1)                        # (G, 8, 128)

        @pl.when(li == pl.num_programs(1) - 1)
        def _finalize():
            # single cross-sublane 8->1 reduce, then mean over the true L
            o_ref[...] = (jnp.sum(acc_ref[...], axis=1) * inv_l).astype(o_ref.dtype)

    return kernel


def mlp_forward(x, params, *, compute_dtype=jnp.bfloat16, l_tile=None,
                batch_group=None):
    """x: (B, C, L, N) float32. Returns (B, 3) float32."""
    w1, b1, w2, b2, w3, b3 = params
    B, C, L, N = x.shape
    D = C * N
    assert w1.shape[0] == D, f"C*N ({D}) must equal 2*feat_dim ({w1.shape[0]})"
    H1, H2, OUT = w1.shape[1], w2.shape[1], w3.shape[1]
    assert OUT <= OUT_PAD
    cbytes = jnp.dtype(compute_dtype).itemsize

    def fits(tl, g=1):
        return _vmem_bytes(g, C, tl, N, D, H1, H2, cbytes) <= _VMEM_BUDGET

    TL = l_tile if l_tile is not None else _pick_l_tile(L, fits)
    assert TL % 8 == 0, TL
    nL = pl.cdiv(L, TL)
    ragged = (L % TL) != 0

    # Fold several batches into one grid step for tiny-L workloads (restores
    # MXU M-utilization, amortizes per-step overhead).  G must divide B and be
    # either == B or a multiple of 8 so the (G, 128) output block tiles cleanly.
    if batch_group is not None:
        G = batch_group
    elif nL == 1:
        G = 1
        for g in range(B, 0, -1):
            if B % g == 0 and (g == B or g % 8 == 0) and g * TL <= 512 and fits(TL, g):
                G = g
                break
    else:
        G = 1
    assert B % G == 0, (B, G)

    # Kernel-side weight layouts (tiny, done once):
    #   W1 stays (C*N, 512) -- its rows already match the concat order.
    #   W3/b3 zero-padded to 128 output lanes (ReLU keeps padded lanes at 0).
    w1_c = w1.astype(compute_dtype)
    w2_c = w2.astype(compute_dtype)
    w3_p = jnp.zeros((H2, OUT_PAD), compute_dtype).at[:, :OUT].set(
        w3.astype(compute_dtype))
    b1_r = b1.reshape(1, H1).astype(jnp.float32)
    b2_r = b2.reshape(1, H2).astype(jnp.float32)
    b3_p = jnp.zeros((1, OUT_PAD), jnp.float32).at[:, :OUT].set(
        b3.reshape(1, OUT).astype(jnp.float32))

    kernel = _make_mlp_kernel(G, C, TL, L, ragged, compute_dtype)

    out_pad = pl.pallas_call(
        kernel,
        out_shape=jax.ShapeDtypeStruct((B, OUT_PAD), jnp.float32),
        grid=(B // G, nL),
        in_specs=[
            # activation tile: raw NCHW layout, G batches x TL rows per step
            pl.BlockSpec((G, C, TL, N), lambda b, l: (b, 0, l, 0)),
            # weights/biases: constant index maps -> resident, DMA'd once
            pl.BlockSpec((D, H1), lambda b, l: (0, 0)),
            pl.BlockSpec((1, H1), lambda b, l: (0, 0)),
            pl.BlockSpec((H1, H2), lambda b, l: (0, 0)),
            pl.BlockSpec((1, H2), lambda b, l: (0, 0)),
            pl.BlockSpec((H2, OUT_PAD), lambda b, l: (0, 0)),
            pl.BlockSpec((1, OUT_PAD), lambda b, l: (0, 0)),
        ],
        # lane-dense (G, 128) output slab, resident across the L ("arbitrary") axis
        out_specs=pl.BlockSpec((G, OUT_PAD), lambda b, l: (b, 0)),
        scratch_shapes=[pltpu.VMEM((G, 8, OUT_PAD), jnp.float32)],
        compiler_params=pltpu.CompilerParams(
            dimension_semantics=("parallel", "arbitrary")),
    )(x, w1_c, b1_r, w2_c, b2_r, w3_p, b3_p)

    return out_pad[:, :OUT]


def init_params(key, feat_dim):
    """Deterministic synthetic parameters matching nn.Linear shapes (stored (in, out))."""
    d_in = 2 * feat_dim
    dims = [(d_in, 512), (512, 128), (128, 3)]
    params = []
    for i, (di, do) in enumerate(dims):
        kw, kb = jax.random.split(jax.random.fold_in(key, i))
        scale = 1.0 / jnp.sqrt(di)
        w = jax.random.uniform(kw, (di, do), jnp.float32, -scale, scale)
        b = jax.random.uniform(kb, (1, do), jnp.float32, -scale, scale)
        params += [w, b]
    return tuple(params)


def reference_forward(x, params):
    """Pure-JAX f32 reference mirroring the PyTorch forward."""
    w1, b1, w2, b2, w3, b3 = params
    B, C, L, N = x.shape
    feat = jnp.transpose(x, (0, 2, 1, 3)).reshape(B, L, -1)
    h = jnp.maximum(feat @ w1 + b1, 0.0)
    h = jnp.maximum(h @ w2 + b2, 0.0)
    h = jnp.maximum(h @ w3 + b3, 0.0)
    return h.mean(axis=1)


if __name__ == "__main__":
    key = jax.random.PRNGKey(0)

    # Small shapes: feat_dim=32 so that C*N = 2*feat_dim = 64.
    feat_dim = 32
    B, C, L, N = 2, 4, 16, 16   # C*N = 64 = 2*feat_dim

    kx, kp = jax.random.split(key)
    x = jax.random.normal(kx, (B, C, L, N), jnp.float32)
    params = init_params(kp, feat_dim)
    ref = reference_forward(x, params)

    # bf16 MXU inputs, f32 accumulation (production path).
    out_bf16 = jax.block_until_ready(
        mlp_forward(x, params, compute_dtype=jnp.bfloat16))
    assert out_bf16.shape == (B, 3), out_bf16.shape
    assert jnp.allclose(out_bf16, ref, atol=2e-2, rtol=2e-2), (out_bf16, ref)

    # f32 compute path (tolerance loose: MXU f32 may use reduced internal precision).
    out_f32 = jax.block_until_ready(
        mlp_forward(x, params, compute_dtype=jnp.float32))
    assert out_f32.shape == (B, 3), out_f32.shape
    assert jnp.allclose(out_f32, ref, atol=2e-2, rtol=2e-2), (out_f32, ref)

    # Ragged-L path: L not divisible by any candidate tile -> masked final tile.
    B2, L2 = 3, 20
    x2 = jax.random.normal(jax.random.fold_in(key, 7), (B2, C, L2, N), jnp.float32)
    ref2 = reference_forward(x2, params)
    out2 = jax.block_until_ready(
        mlp_forward(x2, params, compute_dtype=jnp.bfloat16))
    assert out2.shape == (B2, 3), out2.shape
    assert jnp.allclose(out2, ref2, atol=2e-2, rtol=2e-2), (out2, ref2)

    print("KERNEL_OK")
</pallas_src>

<mosaic_0001>
module attributes {stable_mosaic.version = 11 : i64} {
  func.func @kernel(%arg0: i32, %arg1: i32, %arg2: memref<2x4x16x16xf32, #tpu.memory_space<vmem>>, %arg3: memref<64x512xbf16, #tpu.memory_space<vmem>>, %arg4: memref<1x512xf32, #tpu.memory_space<vmem>>, %arg5: memref<512x128xbf16, #tpu.memory_space<vmem>>, %arg6: memref<1x128xf32, #tpu.memory_space<vmem>>, %arg7: memref<128x128xbf16, #tpu.memory_space<vmem>>, %arg8: memref<1x128xf32, #tpu.memory_space<vmem>>, %arg9: memref<2x128xf32, #tpu.memory_space<vmem>>, %arg10: memref<2x8x128xf32, #tpu.memory_space<vmem>>) attributes {dimension_semantics = [#tpu.dimension_semantics<parallel>, #tpu.dimension_semantics<arbitrary>], iteration_bounds = array<i64: 1, 1>, scalar_prefetch = 0 : i64, scratch_operands = 1 : i64, tpu.core_type = #tpu.core_type<tc>, window_params = [{transform_indices = @transform_0, window_bounds = array<i64: 2, 4, 16, 16>}, {pipeline_mode = #tpu.pipeline_mode<synchronous>, transform_indices = @transform_1, window_bounds = array<i64: 64, 512>}, {pipeline_mode = #tpu.pipeline_mode<synchronous>, transform_indices = @transform_2, window_bounds = array<i64: 1, 512>}, {pipeline_mode = #tpu.pipeline_mode<synchronous>, transform_indices = @transform_3, window_bounds = array<i64: 512, 128>}, {pipeline_mode = #tpu.pipeline_mode<synchronous>, transform_indices = @transform_4, window_bounds = array<i64: 1, 128>}, {pipeline_mode = #tpu.pipeline_mode<synchronous>, transform_indices = @transform_5, window_bounds = array<i64: 128, 128>}, {pipeline_mode = #tpu.pipeline_mode<synchronous>, transform_indices = @transform_6, window_bounds = array<i64: 1, 128>}, {transform_indices = @transform_7, window_bounds = array<i64: 2, 128>}]} {
    %c0_i32 = arith.constant 0 : i32
    %0 = arith.cmpi eq, %arg1, %c0_i32 : i32
    %1 = arith.extui %0 : i1 to i32
    %c0_i32_0 = arith.constant 0 : i32
    %2 = arith.cmpi ne, %1, %c0_i32_0 : i32
    scf.if %2 {
      %cst_55 = arith.constant 0.000000e+00 : f32
      %54 = vector.broadcast %cst_55 : f32 to vector<2x8x128xf32>
      %c0_56 = arith.constant 0 : index
      %c0_57 = arith.constant 0 : index
      %c0_58 = arith.constant 0 : index
      %55 = vector.load %arg10[%c0_56, %c0_57, %c0_58] : memref<2x8x128xf32, #tpu.memory_space<vmem>>, vector<2x8x128xf32>
      tpu.vector_store %arg10[%c0_56, %c0_57, %c0_58], %54 {strides = array<i32>} : memref<2x8x128xf32, #tpu.memory_space<vmem>>, vector<2x8x128xf32>,
    } else {
    }
    %c0 = arith.constant 0 : index
    %c0_1 = arith.constant 0 : index
    %c0_2 = arith.constant 0 : index
    %c0_3 = arith.constant 0 : index
    %3 = vector.load %arg2[%c0, %c0_1, %c0_2, %c0_3] : memref<2x4x16x16xf32, #tpu.memory_space<vmem>>, vector<1x1x16x16xf32>
    %4 = vector.shape_cast %3 : vector<1x1x16x16xf32> to vector<16x16xf32>
    %c0_4 = arith.constant 0 : index
    %c1 = arith.constant 1 : index
    %c0_5 = arith.constant 0 : index
    %c0_6 = arith.constant 0 : index
    %5 = vector.load %arg2[%c0_4, %c1, %c0_5, %c0_6] : memref<2x4x16x16xf32, #tpu.memory_space<vmem>>, vector<1x1x16x16xf32>
    %6 = vector.shape_cast %5 : vector<1x1x16x16xf32> to vector<16x16xf32>
    %c0_7 = arith.constant 0 : index
    %c2 = arith.constant 2 : index
    %c0_8 = arith.constant 0 : index
    %c0_9 = arith.constant 0 : index
    %7 = vector.load %arg2[%c0_7, %c2, %c0_8, %c0_9] : memref<2x4x16x16xf32, #tpu.memory_space<vmem>>, vector<1x1x16x16xf32>
    %8 = vector.shape_cast %7 : vector<1x1x16x16xf32> to vector<16x16xf32>
    %c0_10 = arith.constant 0 : index
    %c3 = arith.constant 3 : index
    %c0_11 = arith.constant 0 : index
    %c0_12 = arith.constant 0 : index
    %9 = vector.load %arg2[%c0_10, %c3, %c0_11, %c0_12] : memref<2x4x16x16xf32, #tpu.memory_space<vmem>>, vector<1x1x16x16xf32>
    %10 = vector.shape_cast %9 : vector<1x1x16x16xf32> to vector<16x16xf32>
    %11 = tpu.concatenate %4, %6, %8, %10 in 1 : vector<16x16xf32>, vector<16x16xf32>, vector<16x16xf32>, vector<16x16xf32> -> vector<16x64xf32>
    %c1_13 = arith.constant 1 : index
    %c0_14 = arith.constant 0 : index
    %c0_15 = arith.constant 0 : index
    %c0_16 = arith.constant 0 : index
    %12 = vector.load %arg2[%c1_13, %c0_14, %c0_15, %c0_16] : memref<2x4x16x16xf32, #tpu.memory_space<vmem>>, vector<1x1x16x16xf32>
    %13 = vector.shape_cast %12 : vector<1x1x16x16xf32> to vector<16x16xf32>
    %c1_17 = arith.constant 1 : index
    %c1_18 = arith.constant 1 : index
    %c0_19 = arith.constant 0 : index
    %c0_20 = arith.constant 0 : index
    %14 = vector.load %arg2[%c1_17, %c1_18, %c0_19, %c0_20] : memref<2x4x16x16xf32, #tpu.memory_space<vmem>>, vector<1x1x16x16xf32>
    %15 = vector.shape_cast %14 : vector<1x1x16x16xf32> to vector<16x16xf32>
    %c1_21 = arith.constant 1 : index
    %c2_22 = arith.constant 2 : index
    %c0_23 = arith.constant 0 : index
    %c0_24 = arith.constant 0 : index
    %16 = vector.load %arg2[%c1_21, %c2_22, %c0_23, %c0_24] : memref<2x4x16x16xf32, #tpu.memory_space<vmem>>, vector<1x1x16x16xf32>
    %17 = vector.shape_cast %16 : vector<1x1x16x16xf32> to vector<16x16xf32>
    %c1_25 = arith.constant 1 : index
    %c3_26 = arith.constant 3 : index
    %c0_27 = arith.constant 0 : index
    %c0_28 = arith.constant 0 : index
    %18 = vector.load %arg2[%c1_25, %c3_26, %c0_27, %c0_28] : memref<2x4x16x16xf32, #tpu.memory_space<vmem>>, vector<1x1x16x16xf32>
    %19 = vector.shape_cast %18 : vector<1x1x16x16xf32> to vector<16x16xf32>
    %20 = tpu.concatenate %13, %15, %17, %19 in 1 : vector<16x16xf32>, vector<16x16xf32>, vector<16x16xf32>, vector<16x16xf32> -> vector<16x64xf32>
    %21 = tpu.concatenate %11, %20 in 0 : vector<16x64xf32>, vector<16x64xf32> -> vector<32x64xf32>
    %22 = arith.truncf %21 : vector<32x64xf32> to vector<32x64xbf16>
    %c0_29 = arith.constant 0 : index
    %c0_30 = arith.constant 0 : index
    %23 = vector.load %arg3[%c0_29, %c0_30] : memref<64x512xbf16, #tpu.memory_space<vmem>>, vector<64x512xbf16>
    %cst = arith.constant dense<0.000000e+00> : vector<32x512xf32>
    %24 = tpu.matmul %22, %23, %cst {dimension_numbers = #tpu.dot_dimension_numbers<[1], [0], [0], [1], [0, 0, 1, 1], [], []>} : vector<32x64xbf16>, vector<64x512xbf16>, vector<32x512xf32> -> vector<32x512xf32>
    %c0_31 = arith.constant 0 : index
    %c0_32 = arith.constant 0 : index
    %25 = vector.load %arg4[%c0_31, %c0_32] : memref<1x512xf32, #tpu.memory_space<vmem>>, vector<1x512xf32>
    %26 = vector.broadcast %25 : vector<1x512xf32> to vector<32x512xf32>
    %27 = arith.addf %24, %26 : vector<32x512xf32>
    %cst_33 = arith.constant 0.000000e+00 : f32
    %28 = vector.broadcast %cst_33 : f32 to vector<32x512xf32>
    %29 = arith.maximumf %27, %28 : vector<32x512xf32>
    %30 = arith.truncf %29 : vector<32x512xf32> to vector<32x512xbf16>
    %c0_34 = arith.constant 0 : index
    %c0_35 = arith.constant 0 : index
    %31 = vector.load %arg5[%c0_34, %c0_35] : memref<512x128xbf16, #tpu.memory_space<vmem>>, vector<512x128xbf16>
    %cst_36 = arith.constant dense<0.000000e+00> : vector<32x128xf32>
    %32 = tpu.matmul %30, %31, %cst_36 {dimension_numbers = #tpu.dot_dimension_numbers<[1], [0], [0], [1], [0, 0, 1, 1], [], []>} : vector<32x512xbf16>, vector<512x128xbf16>, vector<32x128xf32> -> vector<32x128xf32>
    %c0_37 = arith.constant 0 : index
    %c0_38 = arith.constant 0 : index
    %33 = vector.load %arg6[%c0_37, %c0_38] : memref<1x128xf32, #tpu.memory_space<vmem>>, vector<1x128xf32>
    %34 = vector.broadcast %33 : vector<1x128xf32> to vector<32x128xf32>
    %35 = arith.addf %32, %34 : vector<32x128xf32>
    %cst_39 = arith.constant 0.000000e+00 : f32
    %36 = vector.broadcast %cst_39 : f32 to vector<32x128xf32>
    %37 = arith.maximumf %35, %36 : vector<32x128xf32>
    %38 = arith.truncf %37 : vector<32x128xf32> to vector<32x128xbf16>
    %c0_40 = arith.constant 0 : index
    %c0_41 = arith.constant 0 : index
    %39 = vector.load %arg7[%c0_40, %c0_41] : memref<128x128xbf16, #tpu.memory_space<vmem>>, vector<128x128xbf16>
    %cst_42 = arith.constant dense<0.000000e+00> : vector<32x128xf32>
    %40 = tpu.matmul %38, %39, %cst_42 {dimension_numbers = #tpu.dot_dimension_numbers<[1], [0], [0], [1], [0, 0, 1, 1], [], []>} : vector<32x128xbf16>, vector<128x128xbf16>, vector<32x128xf32> -> vector<32x128xf32>
    %c0_43 = arith.constant 0 : index
    %c0_44 = arith.constant 0 : index
    %41 = vector.load %arg8[%c0_43, %c0_44] : memref<1x128xf32, #tpu.memory_space<vmem>>, vector<1x128xf32>
    %42 = vector.broadcast %41 : vector<1x128xf32> to vector<32x128xf32>
    %43 = arith.addf %40, %42 : vector<32x128xf32>
    %cst_45 = arith.constant 0.000000e+00 : f32
    %44 = vector.broadcast %cst_45 : f32 to vector<32x128xf32>
    %45 = arith.maximumf %43, %44 : vector<32x128xf32>
    %46 = vector.shape_cast %45 : vector<32x128xf32> to vector<2x2x8x128xf32>
    %c0_46 = arith.constant 0 : index
    %c0_47 = arith.constant 0 : index
    %c0_48 = arith.constant 0 : index
    %47 = vector.load %arg10[%c0_46, %c0_47, %c0_48] : memref<2x8x128xf32, #tpu.memory_space<vmem>>, vector<2x8x128xf32>
    %cst_49 = arith.constant dense<0.000000e+00> : vector<2x8x128xf32>
    %48 = vector.multi_reduction <add>, %46, %cst_49 [1] : vector<2x2x8x128xf32> to vector<2x8x128xf32>
    %49 = arith.addf %47, %48 : vector<2x8x128xf32>
    %c0_50 = arith.constant 0 : index
    %c0_51 = arith.constant 0 : index
    %c0_52 = arith.constant 0 : index
    %50 = vector.load %arg10[%c0_50, %c0_51, %c0_52] : memref<2x8x128xf32, #tpu.memory_space<vmem>>, vector<2x8x128xf32>
    tpu.vector_store %arg10[%c0_50, %c0_51, %c0_52], %49 {strides = array<i32>} : memref<2x8x128xf32, #tpu.memory_space<vmem>>, vector<2x8x128xf32>,
    %c0_i32_53 = arith.constant 0 : i32
    %51 = arith.cmpi eq, %arg1, %c0_i32_53 : i32
    %52 = arith.extui %51 : i1 to i32
    %c0_i32_54 = arith.constant 0 : i32
    %53 = arith.cmpi ne, %52, %c0_i32_54 : i32
    scf.if %53 {
      %c0_55 = arith.constant 0 : index
      %c0_56 = arith.constant 0 : index
      %c0_57 = arith.constant 0 : index
      %54 = vector.load %arg10[%c0_55, %c0_56, %c0_57] : memref<2x8x128xf32, #tpu.memory_space<vmem>>, vector<2x8x128xf32>
      %cst_58 = arith.constant dense<0.000000e+00> : vector<2x128xf32>
      %55 = vector.multi_reduction <add>, %54, %cst_58 [1] : vector<2x8x128xf32> to vector<2x128xf32>
      %cst_59 = arith.constant 6.250000e-02 : f32
      %56 = vector.broadcast %cst_59 : f32 to vector<2x128xf32>
      %57 = arith.mulf %55, %56 : vector<2x128xf32>
      %c0_60 = arith.constant 0 : index
      %c0_61 = arith.constant 0 : index
      %58 = vector.load %arg9[%c0_60, %c0_61] : memref<2x128xf32, #tpu.memory_space<vmem>>, vector<2x128xf32>
      tpu.vector_store %arg9[%c0_60, %c0_61], %57 {strides = array<i32>} : memref<2x128xf32, #tpu.memory_space<vmem>>, vector<2x128xf32>,
    } else {
    }
    return
  }
  func.func @transform_0(%arg0: i32, %arg1: i32) -> (i32, i32, i32, i32) {
    %c0_i32 = arith.constant 0 : i32
    %c0_i32_0 = arith.constant 0 : i32
    %c0_i32_1 = arith.constant 0 : i32
    return %arg0, %c0_i32, %arg1, %c0_i32_0 : i32, i32, i32, i32
  }
  func.func @transform_1(%arg0: i32, %arg1: i32) -> (i32, i32) {
    %c0_i32 = arith.constant 0 : i32
    %c0_i32_0 = arith.constant 0 : i32
    %c0_i32_1 = arith.constant 0 : i32
    return %c0_i32, %c0_i32_0 : i32, i32
  }
  func.func @transform_2(%arg0: i32, %arg1: i32) -> (i32, i32) {
    %c0_i32 = arith.constant 0 : i32
    %c0_i32_0 = arith.constant 0 : i32
    %c0_i32_1 = arith.constant 0 : i32
    return %c0_i32, %c0_i32_0 : i32, i32
  }
  func.func @transform_3(%arg0: i32, %arg1: i32) -> (i32, i32) {
    %c0_i32 = arith.constant 0 : i32
    %c0_i32_0 = arith.constant 0 : i32
    %c0_i32_1 = arith.constant 0 : i32
    return %c0_i32, %c0_i32_0 : i32, i32
  }
  func.func @transform_4(%arg0: i32, %arg1: i32) -> (i32, i32) {
    %c0_i32 = arith.constant 0 : i32
    %c0_i32_0 = arith.constant 0 : i32
    %c0_i32_1 = arith.constant 0 : i32
    return %c0_i32, %c0_i32_0 : i32, i32
  }
  func.func @transform_5(%arg0: i32, %arg1: i32) -> (i32, i32) {
    %c0_i32 = arith.constant 0 : i32
    %c0_i32_0 = arith.constant 0 : i32
    %c0_i32_1 = arith.constant 0 : i32
    return %c0_i32, %c0_i32_0 : i32, i32
  }
  func.func @transform_6(%arg0: i32, %arg1: i32) -> (i32, i32) {
    %c0_i32 = arith.constant 0 : i32
    %c0_i32_0 = arith.constant 0 : i32
    %c0_i32_1 = arith.constant 0 : i32
    return %c0_i32, %c0_i32_0 : i32, i32
  }
  func.func @transform_7(%arg0: i32, %arg1: i32) -> (i32, i32) {
    %c0_i32 = arith.constant 0 : i32
    %c0_i32_0 = arith.constant 0 : i32
    return %arg0, %c0_i32 : i32, i32
  }
}

</mosaic_0001>

<llo_original>
// kernel: tpu_custom_call.1
$region0: #{tpu_custom_call.1}
  #allocation0 [shape = 'u32[]', space=smem, size = 0x4, offset = 0x4, fixed_abs, tag = 'smem constant byte address 0x4 - core index']
  #allocation1 [shape = 'u32[72,128]{1,0:T(1,128)}', space=vmem, size = 0x9000, scoped, tag = 'internal scratch']
  #allocation2 [shape = 'f32[2,8,128]{2,1,0:T(8,128)}', space=vmem, size = 0x2000, scoped, tag = 'scratch operand']
  %s0 = inlined_call_operand.hbm [shape: f32[2,4,16,16], index: 0, kind: input, shape index: {}]
  %s1 = inlined_call_operand.hbm [shape: bf16[64,512], index: 1, kind: input, shape index: {}]
  %s2 = inlined_call_operand.hbm [shape: f32[1,512], index: 2, kind: input, shape index: {}]
  %s3 = inlined_call_operand.hbm [shape: bf16[512,128], index: 3, kind: input, shape index: {}]
  %s4 = inlined_call_operand.vmem [shape: f32[1,128], index: 4, kind: input, shape index: {}]
  %s5 = inlined_call_operand.hbm [shape: bf16[128,128], index: 5, kind: input, shape index: {}]
  %s6 = inlined_call_operand.vmem [shape: f32[1,128], index: 6, kind: input, shape index: {}]
  %s7 = inlined_call_operand.hbm [shape: f32[2,128], index: 7, kind: output, shape index: {}]
  %s8 = sld [smem:[#allocation0]]
  $region66: #{tpu_custom_call.1} parent=0
    _
  %s10 = ssub.s32 1, %s8
  %s11 = scalar_select 0, %s10, %s8
  $region1: #{tpu_custom_call.1} parent=0
    #allocation3 [shape = 'u8[65536]{0}', space=vmem, size = 0x10000, scoped, tag = 'input window, operand 0, single buffered']
    #allocation4 [shape = 's32[1]{0}', space=sflag, size = 0x4, scoped, tag = 'scoped memory for tpu_custom_call.1']
    #allocation5 [shape = 's32[1]{0}', space=sflag, size = 0x4, scoped, tag = 'scoped memory for tpu_custom_call.1']
    #allocation6 [shape = 'u8[65536]{0}', space=vmem, size = 0x10000, scoped, tag = 'input window, operand 1, single buffered']
    #allocation7 [shape = 's32[1]{0}', space=sflag, size = 0x4, scoped, tag = 'scoped memory for tpu_custom_call.1']
    #allocation8 [shape = 'u8[2048]{0}', space=vmem, size = 0x800, scoped, tag = 'input window, operand 2, single buffered']
    #allocation9 [shape = 'u8[131072]{0}', space=vmem, size = 0x20000, scoped, tag = 'input window, operand 3, single buffered']
    #allocation10 [shape = 's32[1]{0}', space=sflag, size = 0x4, scoped, tag = 'scoped memory for tpu_custom_call.1']
    #allocation11 [shape = 'u8[32768]{0}', space=vmem, size = 0x8000, scoped, tag = 'input window, operand 5, single buffered']
    #allocation12 [shape = 'u8[1024]{0}', space=vmem, size = 0x400, scoped, tag = 'output window, operand 0, single buffered']
    %12 = vsyncpa [#allocation4], 0
    %13 = vsyncpa [#allocation7], 0
    %14 = vsyncpa [#allocation10], 0
    %15 = vsyncpa [#allocation5], 0
    // Predicated region
    $region2: #{tpu_custom_call.1} parent=1 // pred_check
      _
    $region3: #{tpu_custom_call.1} parent=1 // pred_check_branch
      %17 = sbr.rel (0) target = $region5
    $region4: #{tpu_custom_call.1} parent=1 // pred_region
      %19 = vsyncadd [#allocation4], 0
      %s20 = sshll.u32 %s0, 4
      %s21 = int_to_ptr.hbm [resolvable:$true] %s20
      %s22 = sshll.u32 [#allocation3], 4
      %s23 = int_to_ptr.vmem [resolvable:$true] %s22
      %28 = dma.hbm_to_vmem [thread:$0]  %s21, 2048, %s23, [#allocation4], 128, 128, 8
    $region5: #{tpu_custom_call.1} parent=1 // pred_fallthru
      _
    // Predicated region
    $region6: #{tpu_custom_call.1} parent=1 // pred_check
      _
    $region7: #{tpu_custom_call.1} parent=1 // pred_check_branch
      %30 = sbr.rel (0) target = $region9
    $region8: #{tpu_custom_call.1} parent=1 // pred_region
      %32 = vsyncadd [#allocation7], 0
      %s33 = sshll.u32 %s1, 4
      %s34 = int_to_ptr.hbm [resolvable:$true] %s33
      %s35 = sshll.u32 [#allocation6], 4
      %s36 = int_to_ptr.vmem [resolvable:$true] %s35
      %41 = dma.hbm_to_vmem [thread:$0]  %s34, 2048, %s36, [#allocation7], 256, 256, 16
    $region9: #{tpu_custom_call.1} parent=1 // pred_fallthru
      _
    // Predicated region
    $region10: #{tpu_custom_call.1} parent=1 // pred_check
      _
    $region11: #{tpu_custom_call.1} parent=1 // pred_check_branch
      %43 = sbr.rel (0) target = $region13
    $region12: #{tpu_custom_call.1} parent=1 // pred_region
      %45 = vsyncadd [#allocation7], 0
      %s47 = sshll.u32 %s2, 4
      %s48 = int_to_ptr.hbm [resolvable:$true] %s47
      %s49 = sshll.u32 [#allocation8], 4
      %s50 = int_to_ptr.vmem [resolvable:$true] %s49
      %52 = dma.hbm_to_vmem [thread:$0]  %s48, 64, %s50, [#allocation7]
    $region13: #{tpu_custom_call.1} parent=1 // pred_fallthru
      _
    // Predicated region
    $region14: #{tpu_custom_call.1} parent=1 // pred_check
      _
    $region15: #{tpu_custom_call.1} parent=1 // pred_check_branch
      %54 = sbr.rel (0) target = $region17
    $region16: #{tpu_custom_call.1} parent=1 // pred_region
      %56 = vsyncadd [#allocation10], 0
      %s57 = sshll.u32 %s3, 4
      %s58 = int_to_ptr.hbm [resolvable:$true] %s57
      %s59 = sshll.u32 [#allocation9], 4
      %s60 = int_to_ptr.vmem [resolvable:$true] %s59
      %65 = dma.hbm_to_vmem [thread:$0]  %s58, 4096, %s60, [#allocation10], 64, 64, 4
    $region17: #{tpu_custom_call.1} parent=1 // pred_fallthru
      _
    // Predicated region
    $region18: #{tpu_custom_call.1} parent=1 // pred_check
      _
    $region19: #{tpu_custom_call.1} parent=1 // pred_check_branch
      %67 = sbr.rel (0) target = $region21
    $region20: #{tpu_custom_call.1} parent=1 // pred_region
      _
    $region21: #{tpu_custom_call.1} parent=1 // pred_fallthru
      _
    // Predicated region
    $region22: #{tpu_custom_call.1} parent=1 // pred_check
      _
    $region23: #{tpu_custom_call.1} parent=1 // pred_check_branch
      %69 = sbr.rel (0) target = $region25
    $region24: #{tpu_custom_call.1} parent=1 // pred_region
      %71 = vsyncadd [#allocation10], 0
      %s72 = sshll.u32 %s5, 4
      %s73 = int_to_ptr.hbm [resolvable:$true] %s72
      %s74 = sshll.u32 [#allocation11], 4
      %s75 = int_to_ptr.vmem [resolvable:$true] %s74
      %80 = dma.hbm_to_vmem [thread:$0]  %s73, 1024, %s75, [#allocation10], 64, 64, 4
    $region25: #{tpu_custom_call.1} parent=1 // pred_fallthru
      _
    // Predicated region
    $region26: #{tpu_custom_call.1} parent=1 // pred_check
      _
    $region27: #{tpu_custom_call.1} parent=1 // pred_check_branch
      %82 = sbr.rel (0) target = $region29
    $region28: #{tpu_custom_call.1} parent=1 // pred_region
      _
    $region29: #{tpu_custom_call.1} parent=1 // pred_fallthru
      _
    // Predicated region
    $region30: #{tpu_custom_call.1} parent=1 // pred_check
      _
    $region31: #{tpu_custom_call.1} parent=1 // pred_check_branch
      %84 = sbr.rel (0) target = $region33
    $region32: #{tpu_custom_call.1} parent=1 // pred_region
      %86 = dma.done [#allocation4], 2048
    $region33: #{tpu_custom_call.1} parent=1 // pred_fallthru
      _
    // Predicated region
    $region34: #{tpu_custom_call.1} parent=1 // pred_check
      _
    $region35: #{tpu_custom_call.1} parent=1 // pred_check_branch
      %88 = sbr.rel (0) target = $region37
    $region36: #{tpu_custom_call.1} parent=1 // pred_region
      %90 = dma.done [#allocation7], 2048
    $region37: #{tpu_custom_call.1} parent=1 // pred_fallthru
      _
    // Predicated region
    $region38: #{tpu_custom_call.1} parent=1 // pred_check
      _
    $region39: #{tpu_custom_call.1} parent=1 // pred_check_branch
      %92 = sbr.rel (0) target = $region41
    $region40: #{tpu_custom_call.1} parent=1 // pred_region
      %94 = dma.done [#allocation7], 64
    $region41: #{tpu_custom_call.1} parent=1 // pred_fallthru
      _
    // Predicated region
    $region42: #{tpu_custom_call.1} parent=1 // pred_check
      _
    $region43: #{tpu_custom_call.1} parent=1 // pred_check_branch
      %96 = sbr.rel (0) target = $region45
    $region44: #{tpu_custom_call.1} parent=1 // pred_region
      %98 = dma.done [#allocation10], 4096
    $region45: #{tpu_custom_call.1} parent=1 // pred_fallthru
      _
    // Predicated region
    $region46: #{tpu_custom_call.1} parent=1 // pred_check
      _
    $region47: #{tpu_custom_call.1} parent=1 // pred_check_branch
      %100 = sbr.rel (0) target = $region49
    $region48: #{tpu_custom_call.1} parent=1 // pred_region
      %102 = dma.done [#allocation10], 1024
    $region49: #{tpu_custom_call.1} parent=1 // pred_fallthru
      _
    %p104 = scmp.eq.s32.totalorder 0, 0
    // Predicated region
    $region50: #{tpu_custom_call.1} parent=1 // pred_check
      %p105 = pneg %p104
    $region51: #{tpu_custom_call.1} parent=1 // pred_check_branch
      %107 = sbr.rel (%p105) target = $region53
    $region52: #{tpu_custom_call.1} parent=1 // pred_region
      %108 = vst [vmem:[#allocation2] sm:$0xff] 0.0
      %109 = vst [vmem:[#allocation2 + $0x8] sm:$0xff] 0.0
    $region53: #{tpu_custom_call.1} parent=1 // pred_fallthru
      _
    %v110 = vld [vmem:[#allocation3] sm:$0xff]
    %v111 = vld [vmem:[#allocation3 + $0x8] sm:$0xff]
    %s112 = scalar_lea.vmem [#allocation3], 16
    %v113 = vld [vmem:[%s112] sm:$0xff]
    %v114 = vld [vmem:[%s112 + $0x8] sm:$0xff]
    %s115 = scalar_lea.vmem [#allocation3], 32
    %v116 = vld [vmem:[%s115] sm:$0xff]
    %v117 = vld [vmem:[%s115 + $0x8] sm:$0xff]
    %s118 = scalar_lea.vmem [#allocation3], 48
    %v119 = vld [vmem:[%s118] sm:$0xff]
    %v120 = vld [vmem:[%s118 + $0x8] sm:$0xff]
    %123 = vrot.lane.b32.xlu0 %v113, 16
    %v124 = vpop.permute.xlu0 %123
    %125 = vrot.lane.b32.xlu0 %v114, 16
    %v126 = vpop.permute.xlu0 %125
    %131 = vrot.lane.b32.xlu0 %v116, 32
    %v132 = vpop.permute.xlu0 %131
    %133 = vrot.lane.b32.xlu0 %v117, 32
    %v134 = vpop.permute.xlu0 %133
    %139 = vrot.lane.b32.xlu0 %v119, 48
    %v140 = vpop.permute.xlu0 %139
    %141 = vrot.lane.b32.xlu0 %v120, 48
    %v142 = vpop.permute.xlu0 %141
    %vm145 = vcmask 130048
    %v146 = vsel %vm145, %v110, %v124
    %v147 = vsel %vm145, %v111, %v126
    %vm148 = vcmask 261120
    %v149 = vsel %vm148, %v146, %v132
    %v150 = vsel %vm148, %v147, %v134
    %vm151 = vcmask 392192
    %v152 = vsel %vm151, %v149, %v140
    %v153 = vsel %vm151, %v150, %v142
    %s154 = scalar_lea.vmem [#allocation3], 64
    %v155 = vld [vmem:[%s154] sm:$0xff]
    %v156 = vld [vmem:[%s154 + $0x8] sm:$0xff]
    %s157 = scalar_lea.vmem [#allocation3], 80
    %v158 = vld [vmem:[%s157] sm:$0xff]
    %v159 = vld [vmem:[%s157 + $0x8] sm:$0xff]
    %s160 = scalar_lea.vmem [#allocation3], 96
    %v161 = vld [vmem:[%s160] sm:$0xff]
    %v162 = vld [vmem:[%s160 + $0x8] sm:$0xff]
    %s163 = scalar_lea.vmem [#allocation3], 112
    %v164 = vld [vmem:[%s163] sm:$0xff]
    %v165 = vld [vmem:[%s163 + $0x8] sm:$0xff]
    %168 = vrot.lane.b32.xlu0 %v158, 16
    %v169 = vpop.permute.xlu0 %168
    %170 = vrot.lane.b32.xlu0 %v159, 16
    %v171 = vpop.permute.xlu0 %170
    %176 = vrot.lane.b32.xlu0 %v161, 32
    %v177 = vpop.permute.xlu0 %176
    %178 = vrot.lane.b32.xlu0 %v162, 32
    %v179 = vpop.permute.xlu0 %178
    %184 = vrot.lane.b32.xlu0 %v164, 48
    %v185 = vpop.permute.xlu0 %184
    %186 = vrot.lane.b32.xlu0 %v165, 48
    %v187 = vpop.permute.xlu0 %186
    %v190 = vsel %vm145, %v155, %v169
    %v191 = vsel %vm145, %v156, %v171
    %v192 = vsel %vm148, %v190, %v177
    %v193 = vsel %vm148, %v191, %v179
    %v194 = vsel %vm151, %v192, %v185
    %v195 = vsel %vm151, %v193, %v187
    %v196 = vpack.c.bf16 %v153, %v152
    %v197 = vpack.c.bf16 %v195, %v194
    %v198 = vld [vmem:[#allocation6] sm:$0xff]
    %v199 = vld [vmem:[#allocation6 + $0x8] sm:$0xff]
    %v200 = vld [vmem:[#allocation6 + $0x10] sm:$0xff]
    %v201 = vld [vmem:[#allocation6 + $0x18] sm:$0xff]
    %v202 = vld [vmem:[#allocation6 + $0x20] sm:$0xff]
    %v203 = vld [vmem:[#allocation6 + $0x28] sm:$0xff]
    %v204 = vld [vmem:[#allocation6 + $0x30] sm:$0xff]
    %v205 = vld [vmem:[#allocation6 + $0x38] sm:$0xff]
    %v206 = vld [vmem:[#allocation6 + $0x40] sm:$0xff]
    %v207 = vld [vmem:[#allocation6 + $0x48] sm:$0xff]
    %v208 = vld [vmem:[#allocation6 + $0x50] sm:$0xff]
    %v209 = vld [vmem:[#allocation6 + $0x58] sm:$0xff]
    %v210 = vld [vmem:[#allocation6 + $0x60] sm:$0xff]
    %v211 = vld [vmem:[#allocation6 + $0x68] sm:$0xff]
    %v212 = vld [vmem:[#allocation6 + $0x70] sm:$0xff]
    %v213 = vld [vmem:[#allocation6 + $0x78] sm:$0xff]
    %v214 = vld [vmem:[#allocation8] sm:$0xf]
    %v216 = vperm.slane %v214, 0
    %v217 = vperm.slane %v214, 1
    %v218 = vperm.slane %v214, 2
    %v219 = vperm.slane %v214, 3
    %v240 = vunpack.c.l.b16 %v198
    %v241 = vunpack.c.h.b16 %v198
    %v242 = vunpack.c.l.b16 %v199
    %v243 = vunpack.c.h.b16 %v199
    %v244 = vunpack.c.l.b16 %v200
    %v245 = vunpack.c.h.b16 %v200
    %v246 = vunpack.c.l.b16 %v201
    %v247 = vunpack.c.h.b16 %v201
    %v248 = vunpack.c.l.b16 %v202
    %v249 = vunpack.c.h.b16 %v202
    %v250 = vunpack.c.l.b16 %v203
    %v251 = vunpack.c.h.b16 %v203
    %v252 = vunpack.c.l.b16 %v204
    %v253 = vunpack.c.h.b16 %v204
    %v254 = vunpack.c.l.b16 %v205
    %v255 = vunpack.c.h.b16 %v205
    %v256 = vunpack.c.l.b16 %v206
    %v257 = vunpack.c.h.b16 %v206
    %v258 = vunpack.c.l.b16 %v207
    %v259 = vunpack.c.h.b16 %v207
    %v260 = vunpack.c.l.b16 %v208
    %v261 = vunpack.c.h.b16 %v208
    %v262 = vunpack.c.l.b16 %v209
    %v263 = vunpack.c.h.b16 %v209
    %v264 = vunpack.c.l.b16 %v210
    %v265 = vunpack.c.h.b16 %v210
    %v266 = vunpack.c.l.b16 %v211
    %v267 = vunpack.c.h.b16 %v211
    %v268 = vunpack.c.l.b16 %v212
    %v269 = vunpack.c.h.b16 %v212
    %v270 = vunpack.c.l.b16 %v213
    %v271 = vunpack.c.h.b16 %v213
    %v272 = vpack.c.b16 %v244, %v240
    %v273 = vpack.c.b16 %v245, %v241
    %v274 = vpack.c.b16 %v246, %v242
    %v275 = vpack.c.b16 %v247, %v243
    %v276 = vpack.c.b16 %v252, %v248
    %v277 = vpack.c.b16 %v253, %v249
    %v278 = vpack.c.b16 %v254, %v250
    %v279 = vpack.c.b16 %v255, %v251
    %v280 = vpack.c.b16 %v260, %v256
    %v281 = vpack.c.b16 %v261, %v257
    %v282 = vpack.c.b16 %v262, %v258
    %v283 = vpack.c.b16 %v263, %v259
    %v284 = vpack.c.b16 %v268, %v264
    %v285 = vpack.c.b16 %v269, %v265
    %v286 = vpack.c.b16 %v270, %v266
    %v287 = vpack.c.b16 %v271, %v267
    %vm304 = vcmask 523264
    %v306 = vsel %vm304, %v196, 0
    %v309 = vsel %vm304, %v197, 0
    %311 = vmatpush.bf16.msra.mxu0 0
    %312 = vmatpush.bf16.msra.mxu0 0
    %313 = vmatpush.bf16.msra.mxu0 0
    %314 = vmatpush.bf16.msra.mxu0 0
    %315 = vmatpush.bf16.msra.mxu0 %v284
    %316 = vmatpush.bf16.msra.mxu0 %v280
    %317 = vmatpush.bf16.msra.mxu0 %v276
    %318 = vmatpush.bf16.msra.mxu0 %v272
    %319 = vmatmul.bf16.gmra.mxu0 %v306
    %v320 = vpop.f32.mrf.mxu0
    %v321 = vadd.f32 %v216, %v320
    %v322 = vpop.f32.mrf.mxu0
    %v323 = vadd.f32 %v216, %v322
    %324 = vmatmul.bf16.gmra.mxu0 %v309
    %v325 = vpop.f32.mrf.mxu0
    %v326 = vadd.f32 %v216, %v325
    %v327 = vpop.f32.mrf.mxu0
    %v328 = vadd.f32 %v216, %v327
    %329 = vdwg.mxu0
    %330 = vmatpush.bf16.msra.mxu0 0
    %331 = vmatpush.bf16.msra.mxu0 0
    %332 = vmatpush.bf16.msra.mxu0 0
    %333 = vmatpush.bf16.msra.mxu0 0
    %334 = vmatpush.bf16.msra.mxu0 %v285
    %335 = vmatpush.bf16.msra.mxu0 %v281
    %336 = vmatpush.bf16.msra.mxu0 %v277
    %337 = vmatpush.bf16.msra.mxu0 %v273
    %338 = vmatmul.bf16.gmra.mxu0 %v306
    %v339 = vpop.f32.mrf.mxu0
    %v340 = vadd.f32 %v217, %v339
    %v341 = vpop.f32.mrf.mxu0
    %v342 = vadd.f32 %v217, %v341
    %343 = vmatmul.bf16.gmra.mxu0 %v309
    %v344 = vpop.f32.mrf.mxu0
    %v345 = vadd.f32 %v217, %v344
    %v346 = vpop.f32.mrf.mxu0
    %v347 = vadd.f32 %v217, %v346
    %348 = vdwg.mxu0
    %349 = vmatpush.bf16.msra.mxu0 0
    %350 = vmatpush.bf16.msra.mxu0 0
    %351 = vmatpush.bf16.msra.mxu0 0
    %352 = vmatpush.bf16.msra.mxu0 0
    %353 = vmatpush.bf16.msra.mxu0 %v286
    %354 = vmatpush.bf16.msra.mxu0 %v282
    %355 = vmatpush.bf16.msra.mxu0 %v278
    %356 = vmatpush.bf16.msra.mxu0 %v274
    %357 = vmatmul.bf16.gmra.mxu0 %v306
    %v358 = vpop.f32.mrf.mxu0
    %v359 = vadd.f32 %v218, %v358
    %v360 = vpop.f32.mrf.mxu0
    %v361 = vadd.f32 %v218, %v360
    %362 = vmatmul.bf16.gmra.mxu0 %v309
    %v363 = vpop.f32.mrf.mxu0
    %v364 = vadd.f32 %v218, %v363
    %v365 = vpop.f32.mrf.mxu0
    %v366 = vadd.f32 %v218, %v365
    %367 = vdwg.mxu0
    %368 = vmatpush.bf16.msra.mxu0 0
    %369 = vmatpush.bf16.msra.mxu0 0
    %370 = vmatpush.bf16.msra.mxu0 0
    %371 = vmatpush.bf16.msra.mxu0 0
    %372 = vmatpush.bf16.msra.mxu0 %v287
    %373 = vmatpush.bf16.msra.mxu0 %v283
    %374 = vmatpush.bf16.msra.mxu0 %v279
    %375 = vmatpush.bf16.msra.mxu0 %v275
    %376 = vmatmul.bf16.gmra.mxu0 %v306
    %v377 = vpop.f32.mrf.mxu0
    %v378 = vadd.f32 %v219, %v377
    %v379 = vpop.f32.mrf.mxu0
    %v380 = vadd.f32 %v219, %v379
    %381 = vmatmul.bf16.gmra.mxu0 %v309
    %v382 = vpop.f32.mrf.mxu0
    %v383 = vadd.f32 %v219, %v382
    %v384 = vpop.f32.mrf.mxu0
    %v385 = vadd.f32 %v219, %v384
    %386 = vdwg.mxu0
    %v387 = vmax.f32 %v321, 0.0
    %v388 = vmax.f32 %v340, 0.0
    %v389 = vmax.f32 %v359, 0.0
    %v390 = vmax.f32 %v378, 0.0
    %v391 = vmax.f32 %v323, 0.0
    %v392 = vmax.f32 %v342, 0.0
    %v393 = vmax.f32 %v361, 0.0
    %v394 = vmax.f32 %v380, 0.0
    %v395 = vmax.f32 %v326, 0.0
    %v396 = vmax.f32 %v345, 0.0
    %v397 = vmax.f32 %v364, 0.0
    %v398 = vmax.f32 %v383, 0.0
    %v399 = vmax.f32 %v328, 0.0
    %v400 = vmax.f32 %v347, 0.0
    %v401 = vmax.f32 %v366, 0.0
    %v402 = vmax.f32 %v385, 0.0
    %v403 = vpack.c.bf16 %v391, %v387
    %v404 = vpack.c.bf16 %v392, %v388
    %v405 = vpack.c.bf16 %v393, %v389
    %v406 = vpack.c.bf16 %v394, %v390
    %v407 = vpack.c.bf16 %v399, %v395
    %v408 = vpack.c.bf16 %v400, %v396
    %v409 = vpack.c.bf16 %v401, %v397
    %v410 = vpack.c.bf16 %v402, %v398
    %v411 = vld [vmem:[#allocation9] sm:$0xf]
    %v412 = vld [vmem:[#allocation9 + $0x4] sm:$0xf]
    %v413 = vld [vmem:[#allocation9 + $0x8] sm:$0xf]
    %v414 = vld [vmem:[#allocation9 + $0xc] sm:$0xf]
    %v415 = vld [vmem:[#allocation9 + $0x10] sm:$0xf]
    %v416 = vld [vmem:[#allocation9 + $0x14] sm:$0xf]
    %v417 = vld [vmem:[#allocation9 + $0x18] sm:$0xf]
    %v418 = vld [vmem:[#allocation9 + $0x1c] sm:$0xf]
    %v419 = vld [vmem:[#allocation9 + $0x20] sm:$0xf]
    %v420 = vld [vmem:[#allocation9 + $0x24] sm:$0xf]
    %v421 = vld [vmem:[#allocation9 + $0x28] sm:$0xf]
    %v422 = vld [vmem:[#allocation9 + $0x2c] sm:$0xf]
    %v423 = vld [vmem:[#allocation9 + $0x30] sm:$0xf]
    %v424 = vld [vmem:[#allocation9 + $0x34] sm:$0xf]
    %v425 = vld [vmem:[#allocation9 + $0x38] sm:$0xf]
    %v426 = vld [vmem:[#allocation9 + $0x3c] sm:$0xf]
    %v427 = vld [vmem:[#allocation9 + $0x40] sm:$0xf]
    %v428 = vld [vmem:[#allocation9 + $0x44] sm:$0xf]
    %v429 = vld [vmem:[#allocation9 + $0x48] sm:$0xf]
    %v430 = vld [vmem:[#allocation9 + $0x4c] sm:$0xf]
    %v431 = vld [vmem:[#allocation9 + $0x50] sm:$0xf]
    %v432 = vld [vmem:[#allocation9 + $0x54] sm:$0xf]
    %v433 = vld [vmem:[#allocation9 + $0x58] sm:$0xf]
    %v434 = vld [vmem:[#allocation9 + $0x5c] sm:$0xf]
    %v435 = vld [vmem:[#allocation9 + $0x60] sm:$0xf]
    %v436 = vld [vmem:[#allocation9 + $0x64] sm:$0xf]
    %v437 = vld [vmem:[#allocation9 + $0x68] sm:$0xf]
    %v438 = vld [vmem:[#allocation9 + $0x6c] sm:$0xf]
    %v439 = vld [vmem:[#allocation9 + $0x70] sm:$0xf]
    %v440 = vld [vmem:[#allocation9 + $0x74] sm:$0xf]
    %v441 = vld [vmem:[#allocation9 + $0x78] sm:$0xf]
    %v442 = vld [vmem:[#allocation9 + $0x7c] sm:$0xf]
    %v443 = vld [vmem:[#allocation9 + $0x80] sm:$0xf]
    %v444 = vld [vmem:[#allocation9 + $0x84] sm:$0xf]
    %v445 = vld [vmem:[#allocation9 + $0x88] sm:$0xf]
    %v446 = vld [vmem:[#allocation9 + $0x8c] sm:$0xf]
    %v447 = vld [vmem:[#allocation9 + $0x90] sm:$0xf]
    %v448 = vld [vmem:[#allocation9 + $0x94] sm:$0xf]
    %v449 = vld [vmem:[#allocation9 + $0x98] sm:$0xf]
    %v450 = vld [vmem:[#allocation9 + $0x9c] sm:$0xf]
    %v451 = vld [vmem:[#allocation9 + $0xa0] sm:$0xf]
    %v452 = vld [vmem:[#allocation9 + $0xa4] sm:$0xf]
    %v453 = vld [vmem:[#allocation9 + $0xa8] sm:$0xf]
    %v454 = vld [vmem:[#allocation9 + $0xac] sm:$0xf]
    %v455 = vld [vmem:[#allocation9 + $0xb0] sm:$0xf]
    %v456 = vld [vmem:[#allocation9 + $0xb4] sm:$0xf]
    %v457 = vld [vmem:[#allocation9 + $0xb8] sm:$0xf]
    %v458 = vld [vmem:[#allocation9 + $0xbc] sm:$0xf]
    %v459 = vld [vmem:[#allocation9 + $0xc0] sm:$0xf]
    %v460 = vld [vmem:[#allocation9 + $0xc4] sm:$0xf]
    %v461 = vld [vmem:[#allocation9 + $0xc8] sm:$0xf]
    %v462 = vld [vmem:[#allocation9 + $0xcc] sm:$0xf]
    %v463 = vld [vmem:[#allocation9 + $0xd0] sm:$0xf]
    %v464 = vld [vmem:[#allocation9 + $0xd4] sm:$0xf]
    %v465 = vld [vmem:[#allocation9 + $0xd8] sm:$0xf]
    %v466 = vld [vmem:[#allocation9 + $0xdc] sm:$0xf]
    %v467 = vld [vmem:[#allocation9 + $0xe0] sm:$0xf]
    %v468 = vld [vmem:[#allocation9 + $0xe4] sm:$0xf]
    %v469 = vld [vmem:[#allocation9 + $0xe8] sm:$0xf]
    %v470 = vld [vmem:[#allocation9 + $0xec] sm:$0xf]
    %v471 = vld [vmem:[#allocation9 + $0xf0] sm:$0xf]
    %v472 = vld [vmem:[#allocation9 + $0xf4] sm:$0xf]
    %v473 = vld [vmem:[#allocation9 + $0xf8] sm:$0xf]
    %v474 = vld [vmem:[#allocation9 + $0xfc] sm:$0xf]
    %v475 = vld [vmem:[%s4] sm:$0x1]
    %v477 = vperm.slane %v475, 0
    %v543 = vunpack.c.l.b16 %v411
    %v544 = vunpack.c.l.b16 %v412
    %v545 = vunpack.c.l.b16 %v413
    %v546 = vunpack.c.l.b16 %v414
    %v547 = vunpack.c.l.b16 %v415
    %v548 = vunpack.c.l.b16 %v416
    %v549 = vunpack.c.l.b16 %v417
    %v550 = vunpack.c.l.b16 %v418
    %v551 = vunpack.c.l.b16 %v419
    %v552 = vunpack.c.l.b16 %v420
    %v553 = vunpack.c.l.b16 %v421
    %v554 = vunpack.c.l.b16 %v422
    %v555 = vunpack.c.l.b16 %v423
    %v556 = vunpack.c.l.b16 %v424
    %v557 = vunpack.c.l.b16 %v425
    %v558 = vunpack.c.l.b16 %v426
    %v559 = vunpack.c.l.b16 %v427
    %v560 = vunpack.c.l.b16 %v428
    %v561 = vunpack.c.l.b16 %v429
    %v562 = vunpack.c.l.b16 %v430
    %v563 = vunpack.c.l.b16 %v431
    %v564 = vunpack.c.l.b16 %v432
    %v565 = vunpack.c.l.b16 %v433
    %v566 = vunpack.c.l.b16 %v434
    %v567 = vunpack.c.l.b16 %v435
    %v568 = vunpack.c.l.b16 %v436
    %v569 = vunpack.c.l.b16 %v437
    %v570 = vunpack.c.l.b16 %v438
    %v571 = vunpack.c.l.b16 %v439
    %v572 = vunpack.c.l.b16 %v440
    %v573 = vunpack.c.l.b16 %v441
    %v574 = vunpack.c.l.b16 %v442
    %v575 = vunpack.c.l.b16 %v443
    %v576 = vunpack.c.l.b16 %v444
    %v577 = vunpack.c.l.b16 %v445
    %v578 = vunpack.c.l.b16 %v446
    %v579 = vunpack.c.l.b16 %v447
    %v580 = vunpack.c.l.b16 %v448
    %v581 = vunpack.c.l.b16 %v449
    %v582 = vunpack.c.l.b16 %v450
    %v583 = vunpack.c.l.b16 %v451
    %v584 = vunpack.c.l.b16 %v452
    %v585 = vunpack.c.l.b16 %v453
    %v586 = vunpack.c.l.b16 %v454
    %v587 = vunpack.c.l.b16 %v455
    %v588 = vunpack.c.l.b16 %v456
    %v589 = vunpack.c.l.b16 %v457
    %v590 = vunpack.c.l.b16 %v458
    %v591 = vunpack.c.l.b16 %v459
    %v592 = vunpack.c.l.b16 %v460
    %v593 = vunpack.c.l.b16 %v461
    %v594 = vunpack.c.l.b16 %v462
    %v595 = vunpack.c.l.b16 %v463
    %v596 = vunpack.c.l.b16 %v464
    %v597 = vunpack.c.l.b16 %v465
    %v598 = vunpack.c.l.b16 %v466
    %v599 = vunpack.c.l.b16 %v467
    %v600 = vunpack.c.l.b16 %v468
    %v601 = vunpack.c.l.b16 %v469
    %v602 = vunpack.c.l.b16 %v470
    %v603 = vunpack.c.l.b16 %v471
    %v604 = vunpack.c.l.b16 %v472
    %v605 = vunpack.c.l.b16 %v473
    %v606 = vunpack.c.l.b16 %v474
    %v607 = vpack.c.b16 %v544, %v543
    %v608 = vpack.c.b16 %v546, %v545
    %v609 = vpack.c.b16 %v548, %v547
    %v610 = vpack.c.b16 %v550, %v549
    %v611 = vpack.c.b16 %v552, %v551
    %v612 = vpack.c.b16 %v554, %v553
    %v613 = vpack.c.b16 %v556, %v555
    %v614 = vpack.c.b16 %v558, %v557
    %v615 = vpack.c.b16 %v560, %v559
    %v616 = vpack.c.b16 %v562, %v561
    %v617 = vpack.c.b16 %v564, %v563
    %v618 = vpack.c.b16 %v566, %v565
    %v619 = vpack.c.b16 %v568, %v567
    %v620 = vpack.c.b16 %v570, %v569
    %v621 = vpack.c.b16 %v572, %v571
    %v622 = vpack.c.b16 %v574, %v573
    %v623 = vpack.c.b16 %v576, %v575
    %v624 = vpack.c.b16 %v578, %v577
    %v625 = vpack.c.b16 %v580, %v579
    %v626 = vpack.c.b16 %v582, %v581
    %v627 = vpack.c.b16 %v584, %v583
    %v628 = vpack.c.b16 %v586, %v585
    %v629 = vpack.c.b16 %v588, %v587
    %v630 = vpack.c.b16 %v590, %v589
    %v631 = vpack.c.b16 %v592, %v591
    %v632 = vpack.c.b16 %v594, %v593
    %v633 = vpack.c.b16 %v596, %v595
    %v634 = vpack.c.b16 %v598, %v597
    %v635 = vpack.c.b16 %v600, %v599
    %v636 = vpack.c.b16 %v602, %v601
    %v637 = vpack.c.b16 %v604, %v603
    %v638 = vpack.c.b16 %v606, %v605
    %671 = vmatpush.bf16.msra.mxu0 %v614
    %672 = vmatpush.bf16.msra.mxu0 %v613
    %673 = vmatpush.bf16.msra.mxu0 %v612
    %674 = vmatpush.bf16.msra.mxu0 %v611
    %675 = vmatpush.bf16.msra.mxu0 %v610
    %676 = vmatpush.bf16.msra.mxu0 %v609
    %677 = vmatpush.bf16.msra.mxu0 %v608
    %678 = vmatpush.bf16.msra.mxu0 %v607
    %679 = vmatmul.bf16.gmra.mxu0 %v403
    %v680 = vpop.f32.mrf.mxu0
    %v681 = vadd.f32 %v477, %v680
    %v682 = vpop.f32.mrf.mxu0
    %v683 = vadd.f32 %v477, %v682
    %684 = vmatmul.bf16.gmra.mxu0 %v407
    %v685 = vpop.f32.mrf.mxu0
    %v686 = vadd.f32 %v477, %v685
    %v687 = vpop.f32.mrf.mxu0
    %v688 = vadd.f32 %v477, %v687
    %689 = vdwg.mxu0
    %690 = vmatpush.bf16.msra.mxu0 %v622
    %691 = vmatpush.bf16.msra.mxu0 %v621
    %692 = vmatpush.bf16.msra.mxu0 %v620
    %693 = vmatpush.bf16.msra.mxu0 %v619
    %694 = vmatpush.bf16.msra.mxu0 %v618
    %695 = vmatpush.bf16.msra.mxu0 %v617
    %696 = vmatpush.bf16.msra.mxu0 %v616
    %697 = vmatpush.bf16.msra.mxu0 %v615
    %698 = vmatmul.bf16.gmra.mxu0 %v404
    %v699 = vpop.f32.mrf.mxu0
    %v700 = vadd.f32 %v681, %v699
    %v701 = vpop.f32.mrf.mxu0
    %v702 = vadd.f32 %v683, %v701
    %703 = vmatmul.bf16.gmra.mxu0 %v408
    %v704 = vpop.f32.mrf.mxu0
    %v705 = vadd.f32 %v686, %v704
    %v706 = vpop.f32.mrf.mxu0
    %v707 = vadd.f32 %v688, %v706
    %708 = vdwg.mxu0
    %709 = vmatpush.bf16.msra.mxu0 %v630
    %710 = vmatpush.bf16.msra.mxu0 %v629
    %711 = vmatpush.bf16.msra.mxu0 %v628
    %712 = vmatpush.bf16.msra.mxu0 %v627
    %713 = vmatpush.bf16.msra.mxu0 %v626
    %714 = vmatpush.bf16.msra.mxu0 %v625
    %715 = vmatpush.bf16.msra.mxu0 %v624
    %716 = vmatpush.bf16.msra.mxu0 %v623
    %717 = vmatmul.bf16.gmra.mxu0 %v405
    %v718 = vpop.f32.mrf.mxu0
    %v719 = vadd.f32 %v700, %v718
    %v720 = vpop.f32.mrf.mxu0
    %v721 = vadd.f32 %v702, %v720
    %722 = vmatmul.bf16.gmra.mxu0 %v409
    %v723 = vpop.f32.mrf.mxu0
    %v724 = vadd.f32 %v705, %v723
    %v725 = vpop.f32.mrf.mxu0
    %v726 = vadd.f32 %v707, %v725
    %727 = vdwg.mxu0
    %728 = vmatpush.bf16.msra.mxu0 %v638
    %729 = vmatpush.bf16.msra.mxu0 %v637
    %730 = vmatpush.bf16.msra.mxu0 %v636
    %731 = vmatpush.bf16.msra.mxu0 %v635
    %732 = vmatpush.bf16.msra.mxu0 %v634
    %733 = vmatpush.bf16.msra.mxu0 %v633
    %734 = vmatpush.bf16.msra.mxu0 %v632
    %735 = vmatpush.bf16.msra.mxu0 %v631
    %736 = vmatmul.bf16.gmra.mxu0 %v406
    %v737 = vpop.f32.mrf.mxu0
    %v738 = vadd.f32 %v719, %v737
    %v739 = vpop.f32.mrf.mxu0
    %v740 = vadd.f32 %v721, %v739
    %741 = vmatmul.bf16.gmra.mxu0 %v410
    %v742 = vpop.f32.mrf.mxu0
    %v743 = vadd.f32 %v724, %v742
    %v744 = vpop.f32.mrf.mxu0
    %v745 = vadd.f32 %v726, %v744
    %746 = vdwg.mxu0
    %v747 = vmax.f32 %v738, 0.0
    %v748 = vmax.f32 %v740, 0.0
    %v749 = vmax.f32 %v743, 0.0
    %v750 = vmax.f32 %v745, 0.0
    %v751 = vpack.c.bf16 %v748, %v747
    %v752 = vpack.c.bf16 %v750, %v749
    %v753 = vld [vmem:[#allocation11] sm:$0xf]
    %v754 = vld [vmem:[#allocation11 + $0x4] sm:$0xf]
    %v755 = vld [vmem:[#allocation11 + $0x8] sm:$0xf]
    %v756 = vld [vmem:[#allocation11 + $0xc] sm:$0xf]
    %v757 = vld [vmem:[#allocation11 + $0x10] sm:$0xf]
    %v758 = vld [vmem:[#allocation11 + $0x14] sm:$0xf]
    %v759 = vld [vmem:[#allocation11 + $0x18] sm:$0xf]
    %v760 = vld [vmem:[#allocation11 + $0x1c] sm:$0xf]
    %v761 = vld [vmem:[#allocation11 + $0x20] sm:$0xf]
    %v762 = vld [vmem:[#allocation11 + $0x24] sm:$0xf]
    %v763 = vld [vmem:[#allocation11 + $0x28] sm:$0xf]
    %v764 = vld [vmem:[#allocation11 + $0x2c] sm:$0xf]
    %v765 = vld [vmem:[#allocation11 + $0x30] sm:$0xf]
    %v766 = vld [vmem:[#allocation11 + $0x34] sm:$0xf]
    %v767 = vld [vmem:[#allocation11 + $0x38] sm:$0xf]
    %v768 = vld [vmem:[#allocation11 + $0x3c] sm:$0xf]
    %v769 = vld [vmem:[%s6] sm:$0x1]
    %v771 = vperm.slane %v769, 0
    %v789 = vunpack.c.l.b16 %v753
    %v790 = vunpack.c.l.b16 %v754
    %v791 = vunpack.c.l.b16 %v755
    %v792 = vunpack.c.l.b16 %v756
    %v793 = vunpack.c.l.b16 %v757
    %v794 = vunpack.c.l.b16 %v758
    %v795 = vunpack.c.l.b16 %v759
    %v796 = vunpack.c.l.b16 %v760
    %v797 = vunpack.c.l.b16 %v761
    %v798 = vunpack.c.l.b16 %v762
    %v799 = vunpack.c.l.b16 %v763
    %v800 = vunpack.c.l.b16 %v764
    %v801 = vunpack.c.l.b16 %v765
    %v802 = vunpack.c.l.b16 %v766
    %v803 = vunpack.c.l.b16 %v767
    %v804 = vunpack.c.l.b16 %v768
    %v805 = vpack.c.b16 %v790, %v789
    %v806 = vpack.c.b16 %v792, %v791
    %v807 = vpack.c.b16 %v794, %v793
    %v808 = vpack.c.b16 %v796, %v795
    %v809 = vpack.c.b16 %v798, %v797
    %v810 = vpack.c.b16 %v800, %v799
    %v811 = vpack.c.b16 %v802, %v801
    %v812 = vpack.c.b16 %v804, %v803
    %821 = vmatpush.bf16.msra.mxu0 %v812
    %822 = vmatpush.bf16.msra.mxu0 %v811
    %823 = vmatpush.bf16.msra.mxu0 %v810
    %824 = vmatpush.bf16.msra.mxu0 %v809
    %825 = vmatpush.bf16.msra.mxu0 %v808
    %826 = vmatpush.bf16.msra.mxu0 %v807
    %827 = vmatpush.bf16.msra.mxu0 %v806
    %828 = vmatpush.bf16.msra.mxu0 %v805
    %829 = vmatmul.bf16.gmra.mxu0 %v751
    %v830 = vpop.f32.mrf.mxu0
    %v831 = vadd.f32 %v771, %v830
    %v832 = vpop.f32.mrf.mxu0
    %v833 = vadd.f32 %v771, %v832
    %834 = vmatmul.bf16.gmra.mxu0 %v752
    %v835 = vpop.f32.mrf.mxu0
    %v836 = vadd.f32 %v771, %v835
    %v837 = vpop.f32.mrf.mxu0
    %v838 = vadd.f32 %v771, %v837
    %839 = vdwg.mxu0
    %v840 = vmax.f32 %v831, 0.0
    %v841 = vmax.f32 %v833, 0.0
    %v842 = vmax.f32 %v836, 0.0
    %v843 = vmax.f32 %v838, 0.0
    %v844 = vld [vmem:[#allocation2] sm:$0xff]
    %v845 = vld [vmem:[#allocation2 + $0x8] sm:$0xff]
    %v846 = vadd.f32 %v840, %v841
    %v847 = vadd.f32 %v842, %v843
    %v848 = vadd.f32 %v844, %v846
    %v849 = vadd.f32 %v845, %v847
    %850 = vst [vmem:[#allocation2] sm:$0xff] %v848
    %851 = vst [vmem:[#allocation2 + $0x8] sm:$0xff] %v849
    // Predicated region
    $region54: #{tpu_custom_call.1} parent=1 // pred_check
      %p852 = pneg %p104
    $region55: #{tpu_custom_call.1} parent=1 // pred_check_branch
      %854 = sbr.rel (%p852) target = $region57
    $region56: #{tpu_custom_call.1} parent=1 // pred_region
      %v855 = vld [vmem:[#allocation2] sm:$0xff]
      %v856 = vld [vmem:[#allocation2 + $0x8] sm:$0xff]
      %v857 = vrot.slane %v855, 4
      %v858 = vadd.f32 %v855, %v857
      %v859 = vrot.slane %v858, 2
      %v860 = vadd.f32 %v858, %v859
      %v861 = vrot.slane %v860, 1
      %v862 = vadd.f32 %v860, %v861
      %v863 = vrot.slane %v856, 4
      %v864 = vadd.f32 %v856, %v863
      %v865 = vrot.slane %v864, 2
      %v866 = vadd.f32 %v864, %v865
      %v867 = vrot.slane %v866, 1
      %v868 = vadd.f32 %v866, %v867
      %v869 = vmul.f32 %v862, 0.0625
      %v870 = vmul.f32 %v868, 0.0625
      %vm873 = vcmask 1041409
      %v874 = vsel %vm873, %v870, %v869
      %876 = vst [vmem:[#allocation12] sm:$0x3] %v874
    $region57: #{tpu_custom_call.1} parent=1 // pred_fallthru
      _
    // Predicated region
    $region58: #{tpu_custom_call.1} parent=1 // pred_check
      _
    $region59: #{tpu_custom_call.1} parent=1 // pred_check_branch
      %878 = sbr.rel (0) target = $region61
    $region60: #{tpu_custom_call.1} parent=1 // pred_region
      %880 = vsyncadd [#allocation5], 0
      %s882 = sshll.u32 [#allocation12], 4
      %s883 = int_to_ptr.vmem [resolvable:$true] %s882
      %s884 = sshll.u32 %s7, 4
      %s885 = int_to_ptr.hbm [resolvable:$true] %s884
      %887 = dma.vmem_to_hbm [thread:$0]  %s883, 32, %s885, [#allocation5]
    $region61: #{tpu_custom_call.1} parent=1 // pred_fallthru
      _
    // Predicated region
    $region62: #{tpu_custom_call.1} parent=1 // pred_check
      _
    $region63: #{tpu_custom_call.1} parent=1 // pred_check_branch
      %889 = sbr.rel (0) target = $region65
    $region64: #{tpu_custom_call.1} parent=1 // pred_region
      %891 = dma.done [#allocation5], 32
    $region65: #{tpu_custom_call.1} parent=1 // pred_fallthru
      _
    %892 = vsyncpa [#allocation4], 1
    %893 = vsyncpa [#allocation7], 1
    %894 = vsyncpa [#allocation10], 1
    %895 = vsyncpa [#allocation5], 1

</llo_original>
